<compile_context>
chip_gen: v5e
topology: v5e:2x2
jax: 0.10.0
libtpu: 0.0.40
codegen_flags: <defaults>
</compile_context>

<pallas_src>
import jax
import jax.numpy as jnp
from jax.experimental import pallas as pl
from jax.experimental.pallas import tpu as pltpu


def _linmul_kernel(x_ref, y_ref, w1_ref, w2_ref, b1_ref, b2_ref, o_ref,
                   acc1_ref, acc2_ref):
    k = pl.program_id(2)

    @pl.when(k == 0)
    def _():
        acc1_ref[...] = jnp.zeros_like(acc1_ref)
        acc2_ref[...] = jnp.zeros_like(acc2_ref)

    # Two MXU matmuls per tile (different LHS *and* RHS, so they cannot be fused into a
    # single product without a block-diagonal weight that doubles the FLOPs).
    acc1_ref[...] += jnp.dot(x_ref[...], w1_ref[...], preferred_element_type=jnp.float32)
    acc2_ref[...] += jnp.dot(y_ref[...], w2_ref[...], preferred_element_type=jnp.float32)

    @pl.when(k == pl.num_programs(2) - 1)
    def _():
        # Epilogue: bias add (broadcast over the batch sublanes) + elementwise product.
        o_ref[...] = ((acc1_ref[...] + b1_ref[...]) *
                      (acc2_ref[...] + b2_ref[...])).astype(o_ref.dtype)


def _pad_to(a, rows, cols):
    r, c = a.shape
    if r == rows and c == cols:
        return a
    return jnp.pad(a, ((0, rows - r), (0, cols - c)))


def linear_multiplication_composition(x, y, w1, w2, b1, b2, *, tm=128, tn=128, tk=128):
    """x, y: [B, D]; w1, w2: [D, D] stored as [in, out]; b1, b2: [D] or [1, D]."""
    B, D = x.shape
    b1 = b1.reshape(1, -1)
    b2 = b2.reshape(1, -1)

    # Pad every axis up to a tile multiple (zero K-padding contributes nothing; padded
    # M/N rows/cols are sliced off at the end). For lane-dense demo shapes this is a no-op.
    Mp = tm * pl.cdiv(B, tm)
    Np = tn * pl.cdiv(D, tn)
    Kp = tk * pl.cdiv(D, tk)

    xp = _pad_to(x, Mp, Kp)
    yp = _pad_to(y, Mp, Kp)
    w1p = _pad_to(w1, Kp, Np)
    w2p = _pad_to(w2, Kp, Np)
    b1p = _pad_to(b1, 1, Np)
    b2p = _pad_to(b2, 1, Np)

    grid = (Mp // tm, Np // tn, Kp // tk)

    out = pl.pallas_call(
        _linmul_kernel,
        out_shape=jax.ShapeDtypeStruct((Mp, Np), x.dtype),
        grid_spec=pltpu.PrefetchScalarGridSpec(
            num_scalar_prefetch=0,
            grid=grid,
            in_specs=[
                pl.BlockSpec((tm, tk), lambda i, j, k: (i, k)),   # x
                pl.BlockSpec((tm, tk), lambda i, j, k: (i, k)),   # y
                pl.BlockSpec((tk, tn), lambda i, j, k: (k, j)),   # w1
                pl.BlockSpec((tk, tn), lambda i, j, k: (k, j)),   # w2
                pl.BlockSpec((1, tn), lambda i, j, k: (0, j)),    # b1
                pl.BlockSpec((1, tn), lambda i, j, k: (0, j)),    # b2
            ],
            out_specs=pl.BlockSpec((tm, tn), lambda i, j, k: (i, j)),
            scratch_shapes=[
                pltpu.VMEM((tm, tn), jnp.float32),   # acc for Linear_1(x)
                pltpu.VMEM((tm, tn), jnp.float32),   # acc for Linear_2(y)
            ],
        ),
        compiler_params=pltpu.CompilerParams(
            dimension_semantics=("parallel", "parallel", "arbitrary"),
            vmem_limit_bytes=32 * 1024 * 1024,
        ),
    )(xp, yp, w1p, w2p, b1p, b2p)

    return out[:B, :D]


if __name__ == "__main__":
    B = 256   # batch of (x, y) representation pairs
    D = 256   # representation_size (lane-dense, multiple of 128)

    key = jax.random.PRNGKey(0)
    kx, ky, kw1, kw2, kb1, kb2 = jax.random.split(key, 6)

    x = jax.random.normal(kx, (B, D), dtype=jnp.float32)
    y = jax.random.normal(ky, (B, D), dtype=jnp.float32)

    # PyTorch-Linear-style init: U(-1/sqrt(D), 1/sqrt(D)); weights pre-transposed to [in, out].
    bound = 1.0 / (D ** 0.5)
    w1 = jax.random.uniform(kw1, (D, D), jnp.float32, -bound, bound)
    w2 = jax.random.uniform(kw2, (D, D), jnp.float32, -bound, bound)
    b1 = jax.random.uniform(kb1, (D,), jnp.float32, -bound, bound)
    b2 = jax.random.uniform(kb2, (D,), jnp.float32, -bound, bound)

    out = linear_multiplication_composition(x, y, w1, w2, b1, b2)
    jax.block_until_ready(out)

    # Pure-JAX reference: (x @ W1 + b1) * (y @ W2 + b2).
    ref = (jnp.dot(x, w1, precision=jax.lax.Precision.HIGHEST) + b1) * \
          (jnp.dot(y, w2, precision=jax.lax.Precision.HIGHEST) + b2)
    assert out.shape == (B, D)
    assert jnp.allclose(out, ref, atol=1e-4, rtol=1e-4), "mismatch vs reference"

    print("KERNEL_OK")
</pallas_src>

<mosaic_0001>
module attributes {stable_mosaic.version = 11 : i64} {
  func.func @_linmul_kernel(%arg0: i32, %arg1: i32, %arg2: i32, %arg3: memref<128x128xf32, #tpu.memory_space<vmem>>, %arg4: memref<128x128xf32, #tpu.memory_space<vmem>>, %arg5: memref<128x128xf32, #tpu.memory_space<vmem>>, %arg6: memref<128x128xf32, #tpu.memory_space<vmem>>, %arg7: memref<1x128xf32, #tpu.memory_space<vmem>>, %arg8: memref<1x128xf32, #tpu.memory_space<vmem>>, %arg9: memref<128x128xf32, #tpu.memory_space<vmem>>, %arg10: memref<128x128xf32, #tpu.memory_space<vmem>>, %arg11: memref<128x128xf32, #tpu.memory_space<vmem>>) attributes {dimension_semantics = [#tpu.dimension_semantics<parallel>, #tpu.dimension_semantics<parallel>, #tpu.dimension_semantics<arbitrary>], iteration_bounds = array<i64: 2, 2, 2>, scalar_prefetch = 0 : i64, scratch_operands = 2 : i64, tpu.core_type = #tpu.core_type<tc>, window_params = [{transform_indices = @transform_0, window_bounds = array<i64: 128, 128>}, {transform_indices = @transform_1, window_bounds = array<i64: 128, 128>}, {transform_indices = @transform_2, window_bounds = array<i64: 128, 128>}, {transform_indices = @transform_3, window_bounds = array<i64: 128, 128>}, {transform_indices = @transform_4, window_bounds = array<i64: 1, 128>}, {transform_indices = @transform_5, window_bounds = array<i64: 1, 128>}, {transform_indices = @transform_6, window_bounds = array<i64: 128, 128>}]} {
    %c0_i32 = arith.constant 0 : i32
    %0 = arith.cmpi eq, %arg2, %c0_i32 : i32
    %1 = arith.extui %0 : i1 to i32
    %c0_i32_0 = arith.constant 0 : i32
    %2 = arith.cmpi ne, %1, %c0_i32_0 : i32
    scf.if %2 {
      %cst_18 = arith.constant 0.000000e+00 : f32
      %18 = vector.broadcast %cst_18 : f32 to vector<128x128xf32>
      %c0_19 = arith.constant 0 : index
      %c0_20 = arith.constant 0 : index
      %19 = vector.load %arg10[%c0_19, %c0_20] : memref<128x128xf32, #tpu.memory_space<vmem>>, vector<128x128xf32>
      tpu.vector_store %arg10[%c0_19, %c0_20], %18 {strides = array<i32>} : memref<128x128xf32, #tpu.memory_space<vmem>>, vector<128x128xf32>,
      %cst_21 = arith.constant 0.000000e+00 : f32
      %20 = vector.broadcast %cst_21 : f32 to vector<128x128xf32>
      %c0_22 = arith.constant 0 : index
      %c0_23 = arith.constant 0 : index
      %21 = vector.load %arg11[%c0_22, %c0_23] : memref<128x128xf32, #tpu.memory_space<vmem>>, vector<128x128xf32>
      tpu.vector_store %arg11[%c0_22, %c0_23], %20 {strides = array<i32>} : memref<128x128xf32, #tpu.memory_space<vmem>>, vector<128x128xf32>,
    } else {
    }
    %c0 = arith.constant 0 : index
    %c0_1 = arith.constant 0 : index
    %3 = vector.load %arg10[%c0, %c0_1] : memref<128x128xf32, #tpu.memory_space<vmem>>, vector<128x128xf32>
    %c0_2 = arith.constant 0 : index
    %c0_3 = arith.constant 0 : index
    %4 = vector.load %arg3[%c0_2, %c0_3] : memref<128x128xf32, #tpu.memory_space<vmem>>, vector<128x128xf32>
    %c0_4 = arith.constant 0 : index
    %c0_5 = arith.constant 0 : index
    %5 = vector.load %arg5[%c0_4, %c0_5] : memref<128x128xf32, #tpu.memory_space<vmem>>, vector<128x128xf32>
    %cst = arith.constant dense<0.000000e+00> : vector<128x128xf32>
    %6 = tpu.matmul %4, %5, %cst {dimension_numbers = #tpu.dot_dimension_numbers<[1], [0], [0], [1], [0, 0, 1, 1], [], []>} : vector<128x128xf32>, vector<128x128xf32>, vector<128x128xf32> -> vector<128x128xf32>
    %7 = arith.addf %3, %6 : vector<128x128xf32>
    %c0_6 = arith.constant 0 : index
    %c0_7 = arith.constant 0 : index
    %8 = vector.load %arg10[%c0_6, %c0_7] : memref<128x128xf32, #tpu.memory_space<vmem>>, vector<128x128xf32>
    tpu.vector_store %arg10[%c0_6, %c0_7], %7 {strides = array<i32>} : memref<128x128xf32, #tpu.memory_space<vmem>>, vector<128x128xf32>,
    %c0_8 = arith.constant 0 : index
    %c0_9 = arith.constant 0 : index
    %9 = vector.load %arg11[%c0_8, %c0_9] : memref<128x128xf32, #tpu.memory_space<vmem>>, vector<128x128xf32>
    %c0_10 = arith.constant 0 : index
    %c0_11 = arith.constant 0 : index
    %10 = vector.load %arg4[%c0_10, %c0_11] : memref<128x128xf32, #tpu.memory_space<vmem>>, vector<128x128xf32>
    %c0_12 = arith.constant 0 : index
    %c0_13 = arith.constant 0 : index
    %11 = vector.load %arg6[%c0_12, %c0_13] : memref<128x128xf32, #tpu.memory_space<vmem>>, vector<128x128xf32>
    %cst_14 = arith.constant dense<0.000000e+00> : vector<128x128xf32>
    %12 = tpu.matmul %10, %11, %cst_14 {dimension_numbers = #tpu.dot_dimension_numbers<[1], [0], [0], [1], [0, 0, 1, 1], [], []>} : vector<128x128xf32>, vector<128x128xf32>, vector<128x128xf32> -> vector<128x128xf32>
    %13 = arith.addf %9, %12 : vector<128x128xf32>
    %c0_15 = arith.constant 0 : index
    %c0_16 = arith.constant 0 : index
    %14 = vector.load %arg11[%c0_15, %c0_16] : memref<128x128xf32, #tpu.memory_space<vmem>>, vector<128x128xf32>
    tpu.vector_store %arg11[%c0_15, %c0_16], %13 {strides = array<i32>} : memref<128x128xf32, #tpu.memory_space<vmem>>, vector<128x128xf32>,
    %c1_i32 = arith.constant 1 : i32
    %15 = arith.cmpi eq, %arg2, %c1_i32 : i32
    %16 = arith.extui %15 : i1 to i32
    %c0_i32_17 = arith.constant 0 : i32
    %17 = arith.cmpi ne, %16, %c0_i32_17 : i32
    scf.if %17 {
      %c0_18 = arith.constant 0 : index
      %c0_19 = arith.constant 0 : index
      %18 = vector.load %arg10[%c0_18, %c0_19] : memref<128x128xf32, #tpu.memory_space<vmem>>, vector<128x128xf32>
      %c0_20 = arith.constant 0 : index
      %c0_21 = arith.constant 0 : index
      %19 = vector.load %arg7[%c0_20, %c0_21] : memref<1x128xf32, #tpu.memory_space<vmem>>, vector<1x128xf32>
      %20 = vector.broadcast %19 : vector<1x128xf32> to vector<128x128xf32>
      %21 = arith.addf %18, %20 : vector<128x128xf32>
      %c0_22 = arith.constant 0 : index
      %c0_23 = arith.constant 0 : index
      %22 = vector.load %arg11[%c0_22, %c0_23] : memref<128x128xf32, #tpu.memory_space<vmem>>, vector<128x128xf32>
      %c0_24 = arith.constant 0 : index
      %c0_25 = arith.constant 0 : index
      %23 = vector.load %arg8[%c0_24, %c0_25] : memref<1x128xf32, #tpu.memory_space<vmem>>, vector<1x128xf32>
      %24 = vector.broadcast %23 : vector<1x128xf32> to vector<128x128xf32>
      %25 = arith.addf %22, %24 : vector<128x128xf32>
      %26 = arith.mulf %21, %25 : vector<128x128xf32>
      %c0_26 = arith.constant 0 : index
      %c0_27 = arith.constant 0 : index
      %27 = vector.load %arg9[%c0_26, %c0_27] : memref<128x128xf32, #tpu.memory_space<vmem>>, vector<128x128xf32>
      tpu.vector_store %arg9[%c0_26, %c0_27], %26 {strides = array<i32>} : memref<128x128xf32, #tpu.memory_space<vmem>>, vector<128x128xf32>,
    } else {
    }
    return
  }
  func.func @transform_0(%arg0: i32, %arg1: i32, %arg2: i32) -> (i32, i32) {
    %c0_i32 = arith.constant 0 : i32
    return %arg0, %arg2 : i32, i32
  }
  func.func @transform_1(%arg0: i32, %arg1: i32, %arg2: i32) -> (i32, i32) {
    %c0_i32 = arith.constant 0 : i32
    return %arg0, %arg2 : i32, i32
  }
  func.func @transform_2(%arg0: i32, %arg1: i32, %arg2: i32) -> (i32, i32) {
    %c0_i32 = arith.constant 0 : i32
    return %arg2, %arg1 : i32, i32
  }
  func.func @transform_3(%arg0: i32, %arg1: i32, %arg2: i32) -> (i32, i32) {
    %c0_i32 = arith.constant 0 : i32
    return %arg2, %arg1 : i32, i32
  }
  func.func @transform_4(%arg0: i32, %arg1: i32, %arg2: i32) -> (i32, i32) {
    %c0_i32 = arith.constant 0 : i32
    %c0_i32_0 = arith.constant 0 : i32
    return %c0_i32, %arg1 : i32, i32
  }
  func.func @transform_5(%arg0: i32, %arg1: i32, %arg2: i32) -> (i32, i32) {
    %c0_i32 = arith.constant 0 : i32
    %c0_i32_0 = arith.constant 0 : i32
    return %c0_i32, %arg1 : i32, i32
  }
  func.func @transform_6(%arg0: i32, %arg1: i32, %arg2: i32) -> (i32, i32) {
    %c0_i32 = arith.constant 0 : i32
    return %arg0, %arg1 : i32, i32
  }
}

</mosaic_0001>

<llo_original>
// kernel: tpu_custom_call.1
$region0: #{tpu_custom_call.1}
  #allocation0 [shape = 'u32[]', space=smem, size = 0x4, offset = 0x4, fixed_abs, tag = 'smem constant byte address 0x4 - core index']
  #allocation1 [shape = 'u32[72,128]{1,0:T(1,128)}', space=vmem, size = 0x9000, scoped, tag = 'internal scratch']
  #allocation2 [shape = 'f32[128,128]{1,0:T(8,128)}', space=vmem, size = 0x10000, scoped, tag = 'scratch operand']
  #allocation3 [shape = 'f32[128,128]{1,0:T(8,128)}', space=vmem, size = 0x10000, scoped, tag = 'scratch operand']
  %s0 = inlined_call_operand.hbm [shape: f32[256,256], index: 0, kind: input, shape index: {}]
  %s1 = inlined_call_operand.hbm [shape: f32[256,256], index: 1, kind: input, shape index: {}]
  %s2 = inlined_call_operand.hbm [shape: f32[256,256], index: 2, kind: input, shape index: {}]
  %s3 = inlined_call_operand.hbm [shape: f32[256,256], index: 3, kind: input, shape index: {}]
  %s4 = inlined_call_operand.vmem [shape: f32[1,256], index: 4, kind: input, shape index: {}]
  %s5 = inlined_call_operand.vmem [shape: f32[1,256], index: 5, kind: input, shape index: {}]
  %s6 = inlined_call_operand.hbm [shape: f32[256,256], index: 6, kind: output, shape index: {}]
  %s7 = sld [smem:[#allocation0]]
  $region81: #{tpu_custom_call.1} parent=0
    _
  %s9 = ssub.s32 1, %s7
  %s10 = scalar_select 0, %s9, %s7
  $region1: #{tpu_custom_call.1} parent=0
    #allocation4 [shape = 'u8[131072]{0}', space=vmem, size = 0x20000, scoped, tag = 'input window, operand 0']
    #allocation5 [shape = 's32[2]{0}', space=sflag, size = 0x8, scoped, tag = 'scoped memory for tpu_custom_call.1']
    #allocation6 [shape = 's32[2]{0}', space=sflag, size = 0x8, scoped, tag = 'scoped memory for tpu_custom_call.1']
    #allocation7 [shape = 'u8[131072]{0}', space=vmem, size = 0x20000, scoped, tag = 'input window, operand 1']
    #allocation8 [shape = 's32[2]{0}', space=sflag, size = 0x8, scoped, tag = 'scoped memory for tpu_custom_call.1']
    #allocation9 [shape = 'u8[131072]{0}', space=vmem, size = 0x20000, scoped, tag = 'input window, operand 2']
    #allocation10 [shape = 'u8[131072]{0}', space=vmem, size = 0x20000, scoped, tag = 'input window, operand 3']
    #allocation11 [shape = 's32[2]{0}', space=sflag, size = 0x8, scoped, tag = 'scoped memory for tpu_custom_call.1']
    #allocation12 [shape = 'u8[131072]{0}', space=vmem, size = 0x20000, scoped, tag = 'output window, operand 0']
    %11 = vsyncpa [#allocation5], 0
    %s12 = scalar_lea.sflag [#allocation5], 1
    %13 = vsyncpa %s12, 0
    %14 = vsyncpa [#allocation8], 0
    %s15 = scalar_lea.sflag [#allocation8], 1
    %16 = vsyncpa %s15, 0
    %17 = vsyncpa [#allocation11], 0
    %s18 = scalar_lea.sflag [#allocation11], 1
    %19 = vsyncpa %s18, 0
    %20 = vsyncpa [#allocation6], 0
    %s21 = scalar_lea.sflag [#allocation6], 1
    %22 = vsyncpa %s21, 0
    loop: start=0, step=1, limit=10
    $region2: #{tpu_custom_call.1} parent=1 // loop_pre_header
      _
    $region3: #{tpu_custom_call.1} parent=1 // loop_header
      %s24 = sphi 0, %s28
      %p25 = scmp.ge.s32.totalorder %s24, 10
      %s31 = sphi 0, %s50
      %s32 = sphi 0, %s46
      %s33 = sphi 0, %s42
      %s34 = sphi 0, %s31
      %s35 = sphi 0, %s32
      %s36 = sphi 0, %s33
      %s37 = sphi 0, %s34
      %s38 = sphi 0, %s35
      %s39 = sphi 0, %s36
      %s55 = sphi 0, %s57
      %s58 = sphi 0, %s55
      %s59 = sphi 0, %s58
      %s75 = sphi 0, %s59
      %s83 = sphi 0, %s85
      %s86 = sphi 0, %s83
      %s87 = sphi 0, %s86
      %s103 = sphi 0, %s87
      %s111 = sphi 0, %s113
      %s114 = sphi 0, %s111
      %s115 = sphi 0, %s114
      %s131 = sphi 0, %s115
      %s139 = sphi 0, %s141
      %s142 = sphi 0, %s139
      %s143 = sphi 0, %s142
      %s159 = sphi 0, %s143
      %s165 = sphi 0, %s167
      %s168 = sphi 0, %s165
      %s169 = sphi 0, %s168
      %s185 = sphi 0, %s169
      %s191 = sphi 0, %s193
      %s194 = sphi 0, %s191
      %s195 = sphi 0, %s194
      %s211 = sphi 0, %s195
      %s219 = sphi 0, %s221
      %s222 = sphi 0, %s219
      %s223 = sphi 0, %s222
      %s239 = sphi 0, %s223
    $region4: #{tpu_custom_call.1} parent=1 // loop_header_branch
      %27 = sbr.rel (%p25) target = $region8
    $region5: #{tpu_custom_call.1} parent=1 // loop_body
      %s29 = ssub.s32 %s24, 1
      %s30 = ssub.s32 %s24, 2
      %s40 = sadd.s32 1, %s33
      %p41 = scmp.ge.s32.totalorder %s40, 2
      %s42 = scalar_select %p41, 0, %s40
      %s43 = sadd.s32 1, %s32
      %s44 = scalar_select %p41, %s43, %s32
      %p45 = scmp.ge.s32.totalorder %s44, 2
      %s46 = scalar_select %p45, 0, %s44
      %s47 = sadd.s32 1, %s31
      %s48 = scalar_select %p45, %s47, %s31
      %p49 = scmp.ge.s32.totalorder %s48, 2
      %s50 = scalar_select %p49, 0, %s48
      %s51 = ssub.s32 %s31, %s50
      %s52 = ssub.s32 %s33, %s42
      %s53 = sor.u32 %s51, %s52
      %p54 = scmp.eq.s32.totalorder %s53, 0
      %s56 = sadd.s32 %s55, 1
      %s57 = scalar_select %p54, %s55, %s56
      %p60 = pneg %p54
      %p61 = scmp.eq.s32.totalorder %s24, 7
      %p62 = por %p60, %p61
      %p63 = scmp.ne.s32.totalorder %s55, %s58
      %p64 = scmp.eq.s32.totalorder %s24, 0
      %p65 = por %p63, %p64
      %p66 = scmp.ne.s32.totalorder %s55, %s58
      %p67 = scmp.eq.s32.totalorder %s29, 7
      %p68 = por %p66, %p67
      %p69 = scmp.ne.s32.totalorder %s58, %s59
      %p70 = scmp.eq.s32.totalorder %s29, 0
      %p71 = por %p69, %p70
      %p72 = scmp.ne.s32.totalorder %s58, %s59
      %p73 = scmp.eq.s32.totalorder %s30, 7
      %p74 = por %p72, %p73
      %p76 = scmp.ne.s32.totalorder %s59, %s75
      %p77 = scmp.eq.s32.totalorder %s30, 0
      %p78 = por %p76, %p77
      %s79 = ssub.s32 %s31, %s50
      %s80 = ssub.s32 %s33, %s42
      %s81 = sor.u32 %s79, %s80
      %p82 = scmp.eq.s32.totalorder %s81, 0
      %s84 = sadd.s32 %s83, 1
      %s85 = scalar_select %p82, %s83, %s84
      %p88 = pneg %p82
      %p89 = scmp.eq.s32.totalorder %s24, 7
      %p90 = por %p88, %p89
      %p91 = scmp.ne.s32.totalorder %s83, %s86
      %p92 = scmp.eq.s32.totalorder %s24, 0
      %p93 = por %p91, %p92
      %p94 = scmp.ne.s32.totalorder %s83, %s86
      %p95 = scmp.eq.s32.totalorder %s29, 7
      %p96 = por %p94, %p95
      %p97 = scmp.ne.s32.totalorder %s86, %s87
      %p98 = scmp.eq.s32.totalorder %s29, 0
      %p99 = por %p97, %p98
      %p100 = scmp.ne.s32.totalorder %s86, %s87
      %p101 = scmp.eq.s32.totalorder %s30, 7
      %p102 = por %p100, %p101
      %p104 = scmp.ne.s32.totalorder %s87, %s103
      %p105 = scmp.eq.s32.totalorder %s30, 0
      %p106 = por %p104, %p105
      %s107 = ssub.s32 %s33, %s42
      %s108 = ssub.s32 %s32, %s46
      %s109 = sor.u32 %s107, %s108
      %p110 = scmp.eq.s32.totalorder %s109, 0
      %s112 = sadd.s32 %s111, 1
      %s113 = scalar_select %p110, %s111, %s112
      %p116 = pneg %p110
      %p117 = scmp.eq.s32.totalorder %s24, 7
      %p118 = por %p116, %p117
      %p119 = scmp.ne.s32.totalorder %s111, %s114
      %p120 = scmp.eq.s32.totalorder %s24, 0
      %p121 = por %p119, %p120
      %p122 = scmp.ne.s32.totalorder %s111, %s114
      %p123 = scmp.eq.s32.totalorder %s29, 7
      %p124 = por %p122, %p123
      %p125 = scmp.ne.s32.totalorder %s114, %s115
      %p126 = scmp.eq.s32.totalorder %s29, 0
      %p127 = por %p125, %p126
      %p128 = scmp.ne.s32.totalorder %s114, %s115
      %p129 = scmp.eq.s32.totalorder %s30, 7
      %p130 = por %p128, %p129
      %p132 = scmp.ne.s32.totalorder %s115, %s131
      %p133 = scmp.eq.s32.totalorder %s30, 0
      %p134 = por %p132, %p133
      %s135 = ssub.s32 %s33, %s42
      %s136 = ssub.s32 %s32, %s46
      %s137 = sor.u32 %s135, %s136
      %p138 = scmp.eq.s32.totalorder %s137, 0
      %s140 = sadd.s32 %s139, 1
      %s141 = scalar_select %p138, %s139, %s140
      %p144 = pneg %p138
      %p145 = scmp.eq.s32.totalorder %s24, 7
      %p146 = por %p144, %p145
      %p147 = scmp.ne.s32.totalorder %s139, %s142
      %p148 = scmp.eq.s32.totalorder %s24, 0
      %p149 = por %p147, %p148
      %p150 = scmp.ne.s32.totalorder %s139, %s142
      %p151 = scmp.eq.s32.totalorder %s29, 7
      %p152 = por %p150, %p151
      %p153 = scmp.ne.s32.totalorder %s142, %s143
      %p154 = scmp.eq.s32.totalorder %s29, 0
      %p155 = por %p153, %p154
      %p156 = scmp.ne.s32.totalorder %s142, %s143
      %p157 = scmp.eq.s32.totalorder %s30, 7
      %p158 = por %p156, %p157
      %p160 = scmp.ne.s32.totalorder %s143, %s159
      %p161 = scmp.eq.s32.totalorder %s30, 0
      %p162 = por %p160, %p161
      %s163 = ssub.s32 %s32, %s46
      %p164 = scmp.eq.s32.totalorder %s163, 0
      %s166 = sadd.s32 %s165, 1
      %s167 = scalar_select %p164, %s165, %s166
      %p170 = pneg %p164
      %p171 = scmp.eq.s32.totalorder %s24, 7
      %p172 = por %p170, %p171
      %p173 = scmp.ne.s32.totalorder %s165, %s168
      %p174 = scmp.eq.s32.totalorder %s24, 0
      %p175 = por %p173, %p174
      %p176 = scmp.ne.s32.totalorder %s165, %s168
      %p177 = scmp.eq.s32.totalorder %s29, 7
      %p178 = por %p176, %p177
      %p179 = scmp.ne.s32.totalorder %s168, %s169
      %p180 = scmp.eq.s32.totalorder %s29, 0
      %p181 = por %p179, %p180
      %p182 = scmp.ne.s32.totalorder %s168, %s169
      %p183 = scmp.eq.s32.totalorder %s30, 7
      %p184 = por %p182, %p183
      %p186 = scmp.ne.s32.totalorder %s169, %s185
      %p187 = scmp.eq.s32.totalorder %s30, 0
      %p188 = por %p186, %p187
      %s189 = ssub.s32 %s32, %s46
      %p190 = scmp.eq.s32.totalorder %s189, 0
      %s192 = sadd.s32 %s191, 1
      %s193 = scalar_select %p190, %s191, %s192
      %p196 = pneg %p190
      %p197 = scmp.eq.s32.totalorder %s24, 7
      %p198 = por %p196, %p197
      %p199 = scmp.ne.s32.totalorder %s191, %s194
      %p200 = scmp.eq.s32.totalorder %s24, 0
      %p201 = por %p199, %p200
      %p202 = scmp.ne.s32.totalorder %s191, %s194
      %p203 = scmp.eq.s32.totalorder %s29, 7
      %p204 = por %p202, %p203
      %p205 = scmp.ne.s32.totalorder %s194, %s195
      %p206 = scmp.eq.s32.totalorder %s29, 0
      %p207 = por %p205, %p206
      %p208 = scmp.ne.s32.totalorder %s194, %s195
      %p209 = scmp.eq.s32.totalorder %s30, 7
      %p210 = por %p208, %p209
      %p212 = scmp.ne.s32.totalorder %s195, %s211
      %p213 = scmp.eq.s32.totalorder %s30, 0
      %p214 = por %p212, %p213
      %s215 = ssub.s32 %s31, %s50
      %s216 = ssub.s32 %s32, %s46
      %s217 = sor.u32 %s215, %s216
      %p218 = scmp.eq.s32.totalorder %s217, 0
      %s220 = sadd.s32 %s219, 1
      %s221 = scalar_select %p218, %s219, %s220
      %p224 = pneg %p218
      %p225 = scmp.eq.s32.totalorder %s24, 7
      %p226 = por %p224, %p225
      %p227 = scmp.ne.s32.totalorder %s219, %s222
      %p228 = scmp.eq.s32.totalorder %s24, 0
      %p229 = por %p227, %p228
      %p230 = scmp.ne.s32.totalorder %s219, %s222
      %p231 = scmp.eq.s32.totalorder %s29, 7
      %p232 = por %p230, %p231
      %p233 = scmp.ne.s32.totalorder %s222, %s223
      %p234 = scmp.eq.s32.totalorder %s29, 0
      %p235 = por %p233, %p234
      %p236 = scmp.ne.s32.totalorder %s222, %s223
      %p237 = scmp.eq.s32.totalorder %s30, 7
      %p238 = por %p236, %p237
      %p240 = scmp.ne.s32.totalorder %s223, %s239
      %p241 = scmp.eq.s32.totalorder %s30, 0
      %p242 = por %p240, %p241
      %p243 = scmp.le.s32.totalorder 1, %s24
      %p244 = scmp.lt.s32.totalorder %s24, 9
      %p245 = pnand %p243, %p244
      %p246 = pneg %p245
      // Predicated region
      $region9: #{tpu_custom_call.1} parent=5 // pred_check
        _
      $region10: #{tpu_custom_call.1} parent=5 // pred_check_branch
        %248 = sbr.rel (%p245) target = $region12
      $region11: #{tpu_custom_call.1} parent=5 // pred_region
        %s249 = ssub.s32 %s24, 1
      $region12: #{tpu_custom_call.1} parent=5 // pred_fallthru
        _
      %p250 = scmp.lt.s32.totalorder %s24, 8
      // Predicated region
      $region13: #{tpu_custom_call.1} parent=5 // pred_check
        %p251 = pneg %p250
      $region14: #{tpu_custom_call.1} parent=5 // pred_check_branch
        %253 = sbr.rel (%p251) target = $region16
      $region15: #{tpu_custom_call.1} parent=5 // pred_region
        // Predicated region
        $region17: #{tpu_custom_call.1} parent=15 // pred_check
          %p254 = pneg %p65
        $region18: #{tpu_custom_call.1} parent=15 // pred_check_branch
          %256 = sbr.rel (%p254) target = $region20
        $region19: #{tpu_custom_call.1} parent=15 // pred_region
          %s257 = sand.u32 %s55, 1
          %s258 = scalar_lea.sflag [#allocation5], %s257
          %s259 = sand.u32 %s55, 1
          %s260 = smul.addr %s259, 128
          %s261 = scalar_lea.vmem [#allocation4], %s260
          %s262 = smul.u32 16, %s31
          %264 = vsyncadd %s258, 0
          %s265 = smul.addr %s262, 2
          %s266 = sadd.s32 %s33, %s265
          %s267 = smul.addr %s266, 8
          %s268 = scalar_lea.hbm %s0, %s267
          %s269 = sshll.u32 %s268, 4
          %s270 = int_to_ptr.hbm [resolvable:$true] %s269
          %s271 = sshll.u32 %s261, 4
          %s272 = int_to_ptr.vmem [resolvable:$true] %s271
          %277 = dma.hbm_to_vmem [thread:$0]  %s270, 2048, %s272, %s258, 256, 128, 8
        $region20: #{tpu_custom_call.1} parent=15 // pred_fallthru
          _
        // Predicated region
        $region21: #{tpu_custom_call.1} parent=15 // pred_check
          %p278 = pneg %p93
        $region22: #{tpu_custom_call.1} parent=15 // pred_check_branch
          %280 = sbr.rel (%p278) target = $region24
        $region23: #{tpu_custom_call.1} parent=15 // pred_region
          %s281 = sand.u32 %s24, 1
          %s282 = scalar_lea.sflag [#allocation8], %s281
          %s283 = sand.u32 %s83, 1
          %s284 = smul.addr %s283, 128
          %s285 = scalar_lea.vmem [#allocation7], %s284
          %s286 = smul.u32 16, %s31
          %288 = vsyncadd %s282, 0
          %s289 = smul.addr %s286, 2
          %s290 = sadd.s32 %s33, %s289
          %s291 = smul.addr %s290, 8
          %s292 = scalar_lea.hbm %s1, %s291
          %s293 = sshll.u32 %s292, 4
          %s294 = int_to_ptr.hbm [resolvable:$true] %s293
          %s295 = sshll.u32 %s285, 4
          %s296 = int_to_ptr.vmem [resolvable:$true] %s295
          %301 = dma.hbm_to_vmem [thread:$0]  %s294, 2048, %s296, %s282, 256, 128, 8
        $region24: #{tpu_custom_call.1} parent=15 // pred_fallthru
          _
        // Predicated region
        $region25: #{tpu_custom_call.1} parent=15 // pred_check
          %p302 = pneg %p121
        $region26: #{tpu_custom_call.1} parent=15 // pred_check_branch
          %304 = sbr.rel (%p302) target = $region28
        $region27: #{tpu_custom_call.1} parent=15 // pred_region
          %s305 = sand.u32 %s24, 1
          %s306 = scalar_lea.sflag [#allocation8], %s305
          %s307 = sand.u32 %s111, 1
          %s308 = smul.addr %s307, 128
          %s309 = scalar_lea.vmem [#allocation9], %s308
          %s310 = smul.u32 16, %s33
          %312 = vsyncadd %s306, 0
          %s313 = smul.addr %s310, 2
          %s314 = sadd.s32 %s32, %s313
          %s315 = smul.addr %s314, 8
          %s316 = scalar_lea.hbm %s2, %s315
          %s317 = sshll.u32 %s316, 4
          %s318 = int_to_ptr.hbm [resolvable:$true] %s317
          %s319 = sshll.u32 %s309, 4
          %s320 = int_to_ptr.vmem [resolvable:$true] %s319
          %325 = dma.hbm_to_vmem [thread:$0]  %s318, 2048, %s320, %s306, 256, 128, 8
        $region28: #{tpu_custom_call.1} parent=15 // pred_fallthru
          _
        // Predicated region
        $region29: #{tpu_custom_call.1} parent=15 // pred_check
          %p326 = pneg %p149
        $region30: #{tpu_custom_call.1} parent=15 // pred_check_branch
          %328 = sbr.rel (%p326) target = $region32
        $region31: #{tpu_custom_call.1} parent=15 // pred_region
          %s329 = sand.u32 %s139, 1
          %s330 = scalar_lea.sflag [#allocation11], %s329
          %s331 = sand.u32 %s139, 1
          %s332 = smul.addr %s331, 128
          %s333 = scalar_lea.vmem [#allocation10], %s332
          %s334 = smul.u32 16, %s33
          %336 = vsyncadd %s330, 0
          %s337 = smul.addr %s334, 2
          %s338 = sadd.s32 %s32, %s337
          %s339 = smul.addr %s338, 8
          %s340 = scalar_lea.hbm %s3, %s339
          %s341 = sshll.u32 %s340, 4
          %s342 = int_to_ptr.hbm [resolvable:$true] %s341
          %s343 = sshll.u32 %s333, 4
          %s344 = int_to_ptr.vmem [resolvable:$true] %s343
          %349 = dma.hbm_to_vmem [thread:$0]  %s342, 2048, %s344, %s330, 256, 128, 8
        $region32: #{tpu_custom_call.1} parent=15 // pred_fallthru
          _
        // Predicated region
        $region33: #{tpu_custom_call.1} parent=15 // pred_check
          %p350 = pneg %p175
        $region34: #{tpu_custom_call.1} parent=15 // pred_check_branch
          %352 = sbr.rel (%p350) target = $region36
        $region35: #{tpu_custom_call.1} parent=15 // pred_region
          %p353 = scmp.lt.s32.totalorder %s32, 1
          %s354 = scalar_select %p353, %s32, 1
          %s355 = scalar_lea.vmem %s4, %s354
        $region36: #{tpu_custom_call.1} parent=15 // pred_fallthru
          _
        // Predicated region
        $region37: #{tpu_custom_call.1} parent=15 // pred_check
          %p356 = pneg %p201
        $region38: #{tpu_custom_call.1} parent=15 // pred_check_branch
          %358 = sbr.rel (%p356) target = $region40
        $region39: #{tpu_custom_call.1} parent=15 // pred_region
          %p359 = scmp.lt.s32.totalorder %s32, 1
          %s360 = scalar_select %p359, %s32, 1
          %s361 = scalar_lea.vmem %s5, %s360
        $region40: #{tpu_custom_call.1} parent=15 // pred_fallthru
          _
      $region16: #{tpu_custom_call.1} parent=5 // pred_fallthru
        _
      %p362 = scmp.le.s32.totalorder 1, %s24
      %p363 = scmp.lt.s32.totalorder %s24, 9
      %p364 = pnand %p362, %p363
      %p365 = pneg %p364
      // Predicated region
      $region41: #{tpu_custom_call.1} parent=5 // pred_check
        _
      $region42: #{tpu_custom_call.1} parent=5 // pred_check_branch
        %367 = sbr.rel (%p364) target = $region44
      $region43: #{tpu_custom_call.1} parent=5 // pred_region
        %s368 = ssub.s32 %s24, 1
        %s369 = sand.u32 %s58, 1
        %s370 = scalar_lea.sflag [#allocation5], %s369
        %s371 = sand.u32 %s58, 1
        %s372 = smul.addr %s371, 128
        %s373 = scalar_lea.vmem [#allocation4], %s372
        // Predicated region
        $region45: #{tpu_custom_call.1} parent=43 // pred_check
          %p374 = pneg %p71
        $region46: #{tpu_custom_call.1} parent=43 // pred_check_branch
          %376 = sbr.rel (%p374) target = $region48
        $region47: #{tpu_custom_call.1} parent=43 // pred_region
          %378 = dma.done %s370, 2048
        $region48: #{tpu_custom_call.1} parent=43 // pred_fallthru
          _
        %s379 = sand.u32 %s29, 1
        %s380 = scalar_lea.sflag [#allocation8], %s379
        %s381 = sand.u32 %s86, 1
        %s382 = smul.addr %s381, 128
        %s383 = scalar_lea.vmem [#allocation7], %s382
        // Predicated region
        $region49: #{tpu_custom_call.1} parent=43 // pred_check
          %p384 = pneg %p99
        $region50: #{tpu_custom_call.1} parent=43 // pred_check_branch
          %386 = sbr.rel (%p384) target = $region52
        $region51: #{tpu_custom_call.1} parent=43 // pred_region
          %388 = dma.done %s380, 2048
        $region52: #{tpu_custom_call.1} parent=43 // pred_fallthru
          _
        %s389 = sand.u32 %s29, 1
        %s390 = scalar_lea.sflag [#allocation8], %s389
        %s391 = sand.u32 %s114, 1
        %s392 = smul.addr %s391, 128
        %s393 = scalar_lea.vmem [#allocation9], %s392
        // Predicated region
        $region53: #{tpu_custom_call.1} parent=43 // pred_check
          %p394 = pneg %p127
        $region54: #{tpu_custom_call.1} parent=43 // pred_check_branch
          %396 = sbr.rel (%p394) target = $region56
        $region55: #{tpu_custom_call.1} parent=43 // pred_region
          %398 = dma.done %s390, 2048
        $region56: #{tpu_custom_call.1} parent=43 // pred_fallthru
          _
        %s399 = sand.u32 %s142, 1
        %s400 = scalar_lea.sflag [#allocation11], %s399
        %s401 = sand.u32 %s142, 1
        %s402 = smul.addr %s401, 128
        %s403 = scalar_lea.vmem [#allocation10], %s402
        // Predicated region
        $region57: #{tpu_custom_call.1} parent=43 // pred_check
          %p404 = pneg %p155
        $region58: #{tpu_custom_call.1} parent=43 // pred_check_branch
          %406 = sbr.rel (%p404) target = $region60
        $region59: #{tpu_custom_call.1} parent=43 // pred_region
          %408 = dma.done %s400, 2048
        $region60: #{tpu_custom_call.1} parent=43 // pred_fallthru
          _
        %s409 = sand.u32 %s58, 1
        %s410 = scalar_lea.sflag [#allocation5], %s409
        %s411 = sand.u32 %s58, 1
        %s412 = smul.addr %s411, 128
        %s413 = scalar_lea.vmem [#allocation4], %s412
        %p414 = pneg %p71
        %p415 = pneg %p68
        %s416 = sand.u32 %s29, 1
        %s417 = scalar_lea.sflag [#allocation8], %s416
        %s418 = sand.u32 %s86, 1
        %s419 = smul.addr %s418, 128
        %s420 = scalar_lea.vmem [#allocation7], %s419
        %p421 = pneg %p99
        %p422 = pneg %p96
        %s423 = sand.u32 %s29, 1
        %s424 = scalar_lea.sflag [#allocation8], %s423
        %s425 = sand.u32 %s114, 1
        %s426 = smul.addr %s425, 128
        %s427 = scalar_lea.vmem [#allocation9], %s426
        %p428 = pneg %p127
        %p429 = pneg %p124
        %s430 = sand.u32 %s142, 1
        %s431 = scalar_lea.sflag [#allocation11], %s430
        %s432 = sand.u32 %s142, 1
        %s433 = smul.addr %s432, 128
        %s434 = scalar_lea.vmem [#allocation10], %s433
        %p435 = pneg %p155
        %p436 = pneg %p152
        %p437 = scmp.lt.s32.totalorder %s35, 1
        %s438 = scalar_select %p437, %s35, 1
        %s439 = scalar_lea.vmem %s4, %s438
        %p440 = pneg %p181
        %p441 = pneg %p178
        %p442 = scmp.lt.s32.totalorder %s35, 1
        %s443 = scalar_select %p442, %s35, 1
        %s444 = scalar_lea.vmem %s5, %s443
        %p445 = pneg %p207
        %p446 = pneg %p204
        %p447 = pneg %p235
        %p448 = pneg %p232
        %s449 = sand.u32 %s222, 1
        %s450 = scalar_lea.sflag [#allocation6], %s449
        %s451 = sand.u32 %s222, 1
        %s452 = smul.addr %s451, 128
        %s453 = scalar_lea.vmem [#allocation12], %s452
        %s454 = smul.u32 16, %s34
        %s455 = smul.u32 16, %s34
        %s456 = smul.u32 16, %s36
        %s457 = smul.u32 16, %s36
        %p458 = scmp.lt.s32.totalorder %s35, 1
        %s459 = scalar_select %p458, %s35, 1
        %s460 = scalar_lea.vmem %s4, %s459
        %p461 = scmp.lt.s32.totalorder %s35, 1
        %s462 = scalar_select %p461, %s35, 1
        %s463 = scalar_lea.vmem %s5, %s462
        %s464 = smul.u32 16, %s34
        %p465 = scmp.eq.s32.totalorder %s36, 0
        // Predicated region
        $region61: #{tpu_custom_call.1} parent=43 // pred_check
          %p466 = pneg %p465
        $region62: #{tpu_custom_call.1} parent=43 // pred_check_branch
          %468 = sbr.rel (%p466) target = $region64
        $region63: #{tpu_custom_call.1} parent=43 // pred_region
          %469 = vst [vmem:[#allocation2] sm:$0xff] 0.0
          %470 = vst [vmem:[#allocation2 + $0x8] sm:$0xff] 0.0
          %471 = vst [vmem:[#allocation2 + $0x10] sm:$0xff] 0.0
          %472 = vst [vmem:[#allocation2 + $0x18] sm:$0xff] 0.0
          %473 = vst [vmem:[#allocation2 + $0x20] sm:$0xff] 0.0
          %474 = vst [vmem:[#allocation2 + $0x28] sm:$0xff] 0.0
          %475 = vst [vmem:[#allocation2 + $0x30] sm:$0xff] 0.0
          %476 = vst [vmem:[#allocation2 + $0x38] sm:$0xff] 0.0
          %477 = vst [vmem:[#allocation2 + $0x40] sm:$0xff] 0.0
          %478 = vst [vmem:[#allocation2 + $0x48] sm:$0xff] 0.0
          %479 = vst [vmem:[#allocation2 + $0x50] sm:$0xff] 0.0
          %480 = vst [vmem:[#allocation2 + $0x58] sm:$0xff] 0.0
          %481 = vst [vmem:[#allocation2 + $0x60] sm:$0xff] 0.0
          %482 = vst [vmem:[#allocation2 + $0x68] sm:$0xff] 0.0
          %483 = vst [vmem:[#allocation2 + $0x70] sm:$0xff] 0.0
          %484 = vst [vmem:[#allocation2 + $0x78] sm:$0xff] 0.0
          %485 = vst [vmem:[#allocation3] sm:$0xff] 0.0
          %486 = vst [vmem:[#allocation3 + $0x8] sm:$0xff] 0.0
          %487 = vst [vmem:[#allocation3 + $0x10] sm:$0xff] 0.0
          %488 = vst [vmem:[#allocation3 + $0x18] sm:$0xff] 0.0
          %489 = vst [vmem:[#allocation3 + $0x20] sm:$0xff] 0.0
          %490 = vst [vmem:[#allocation3 + $0x28] sm:$0xff] 0.0
          %491 = vst [vmem:[#allocation3 + $0x30] sm:$0xff] 0.0
          %492 = vst [vmem:[#allocation3 + $0x38] sm:$0xff] 0.0
          %493 = vst [vmem:[#allocation3 + $0x40] sm:$0xff] 0.0
          %494 = vst [vmem:[#allocation3 + $0x48] sm:$0xff] 0.0
          %495 = vst [vmem:[#allocation3 + $0x50] sm:$0xff] 0.0
          %496 = vst [vmem:[#allocation3 + $0x58] sm:$0xff] 0.0
          %497 = vst [vmem:[#allocation3 + $0x60] sm:$0xff] 0.0
          %498 = vst [vmem:[#allocation3 + $0x68] sm:$0xff] 0.0
          %499 = vst [vmem:[#allocation3 + $0x70] sm:$0xff] 0.0
          %500 = vst [vmem:[#allocation3 + $0x78] sm:$0xff] 0.0
        $region64: #{tpu_custom_call.1} parent=43 // pred_fallthru
          _
        %v501 = vld [vmem:[#allocation2] sm:$0xff]
        %v502 = vld [vmem:[#allocation2 + $0x8] sm:$0xff]
        %v503 = vld [vmem:[#allocation2 + $0x10] sm:$0xff]
        %v504 = vld [vmem:[#allocation2 + $0x18] sm:$0xff]
        %v505 = vld [vmem:[#allocation2 + $0x20] sm:$0xff]
        %v506 = vld [vmem:[#allocation2 + $0x28] sm:$0xff]
        %v507 = vld [vmem:[#allocation2 + $0x30] sm:$0xff]
        %v508 = vld [vmem:[#allocation2 + $0x38] sm:$0xff]
        %v509 = vld [vmem:[#allocation2 + $0x40] sm:$0xff]
        %v510 = vld [vmem:[#allocation2 + $0x48] sm:$0xff]
        %v511 = vld [vmem:[#allocation2 + $0x50] sm:$0xff]
        %v512 = vld [vmem:[#allocation2 + $0x58] sm:$0xff]
        %v513 = vld [vmem:[#allocation2 + $0x60] sm:$0xff]
        %v514 = vld [vmem:[#allocation2 + $0x68] sm:$0xff]
        %v515 = vld [vmem:[#allocation2 + $0x70] sm:$0xff]
        %v516 = vld [vmem:[#allocation2 + $0x78] sm:$0xff]
        %v517 = vld [vmem:[%s373] sm:$0xff]
        %v518 = vld [vmem:[%s373 + $0x8] sm:$0xff]
        %v519 = vld [vmem:[%s373 + $0x10] sm:$0xff]
        %v520 = vld [vmem:[%s373 + $0x18] sm:$0xff]
        %v521 = vld [vmem:[%s373 + $0x20] sm:$0xff]
        %v522 = vld [vmem:[%s373 + $0x28] sm:$0xff]
        %v523 = vld [vmem:[%s373 + $0x30] sm:$0xff]
        %v524 = vld [vmem:[%s373 + $0x38] sm:$0xff]
        %v525 = vld [vmem:[%s373 + $0x40] sm:$0xff]
        %v526 = vld [vmem:[%s373 + $0x48] sm:$0xff]
        %v527 = vld [vmem:[%s373 + $0x50] sm:$0xff]
        %v528 = vld [vmem:[%s373 + $0x58] sm:$0xff]
        %v529 = vld [vmem:[%s373 + $0x60] sm:$0xff]
        %v530 = vld [vmem:[%s373 + $0x68] sm:$0xff]
        %v531 = vld [vmem:[%s373 + $0x70] sm:$0xff]
        %v532 = vld [vmem:[%s373 + $0x78] sm:$0xff]
        %v533 = vld [vmem:[%s393] sm:$0xff]
        %v534 = vld [vmem:[%s393 + $0x8] sm:$0xff]
        %v535 = vld [vmem:[%s393 + $0x10] sm:$0xff]
        %v536 = vld [vmem:[%s393 + $0x18] sm:$0xff]
        %v537 = vld [vmem:[%s393 + $0x20] sm:$0xff]
        %v538 = vld [vmem:[%s393 + $0x28] sm:$0xff]
        %v539 = vld [vmem:[%s393 + $0x30] sm:$0xff]
        %v540 = vld [vmem:[%s393 + $0x38] sm:$0xff]
        %v541 = vld [vmem:[%s393 + $0x40] sm:$0xff]
        %v542 = vld [vmem:[%s393 + $0x48] sm:$0xff]
        %v543 = vld [vmem:[%s393 + $0x50] sm:$0xff]
        %v544 = vld [vmem:[%s393 + $0x58] sm:$0xff]
        %v545 = vld [vmem:[%s393 + $0x60] sm:$0xff]
        %v546 = vld [vmem:[%s393 + $0x68] sm:$0xff]
        %v547 = vld [vmem:[%s393 + $0x70] sm:$0xff]
        %v548 = vld [vmem:[%s393 + $0x78] sm:$0xff]
        %549 = vmatpush.msra.mxu0 %v548
        %550 = vmatpush.msra.mxu0 %v547
        %551 = vmatpush.msra.mxu0 %v546
        %552 = vmatpush.msra.mxu0 %v545
        %553 = vmatpush.msra.mxu0 %v544
        %554 = vmatpush.msra.mxu0 %v543
        %555 = vmatpush.msra.mxu0 %v542
        %556 = vmatpush.msra.mxu0 %v541
        %557 = vmatpush.msra.mxu0 %v540
        %558 = vmatpush.msra.mxu0 %v539
        %559 = vmatpush.msra.mxu0 %v538
        %560 = vmatpush.msra.mxu0 %v537
        %561 = vmatpush.msra.mxu0 %v536
        %562 = vmatpush.msra.mxu0 %v535
        %563 = vmatpush.msra.mxu0 %v534
        %564 = vmatpush.msra.mxu0 %v533
        %565 = vmatmul.f32.gmra.mxu0 %v517
        %v566 = vpop.f32.mrf.mxu0
        %v567 = vadd.f32 0.0, %v566
        %568 = vmatmul.f32.gmra.mxu0 %v518
        %v569 = vpop.f32.mrf.mxu0
        %v570 = vadd.f32 0.0, %v569
        %571 = vmatmul.f32.gmra.mxu0 %v519
        %v572 = vpop.f32.mrf.mxu0
        %v573 = vadd.f32 0.0, %v572
        %574 = vmatmul.f32.gmra.mxu0 %v520
        %v575 = vpop.f32.mrf.mxu0
        %v576 = vadd.f32 0.0, %v575
        %577 = vmatmul.f32.gmra.mxu0 %v521
        %v578 = vpop.f32.mrf.mxu0
        %v579 = vadd.f32 0.0, %v578
        %580 = vmatmul.f32.gmra.mxu0 %v522
        %v581 = vpop.f32.mrf.mxu0
        %v582 = vadd.f32 0.0, %v581
        %583 = vmatmul.f32.gmra.mxu0 %v523
        %v584 = vpop.f32.mrf.mxu0
        %v585 = vadd.f32 0.0, %v584
        %586 = vmatmul.f32.gmra.mxu0 %v524
        %v587 = vpop.f32.mrf.mxu0
        %v588 = vadd.f32 0.0, %v587
        %589 = vmatmul.f32.gmra.mxu0 %v525
        %v590 = vpop.f32.mrf.mxu0
        %v591 = vadd.f32 0.0, %v590
        %592 = vmatmul.f32.gmra.mxu0 %v526
        %v593 = vpop.f32.mrf.mxu0
        %v594 = vadd.f32 0.0, %v593
        %595 = vmatmul.f32.gmra.mxu0 %v527
        %v596 = vpop.f32.mrf.mxu0
        %v597 = vadd.f32 0.0, %v596
        %598 = vmatmul.f32.gmra.mxu0 %v528
        %v599 = vpop.f32.mrf.mxu0
        %v600 = vadd.f32 0.0, %v599
        %601 = vmatmul.f32.gmra.mxu0 %v529
        %v602 = vpop.f32.mrf.mxu0
        %v603 = vadd.f32 0.0, %v602
        %604 = vmatmul.f32.gmra.mxu0 %v530
        %v605 = vpop.f32.mrf.mxu0
        %v606 = vadd.f32 0.0, %v605
        %607 = vmatmul.f32.gmra.mxu0 %v531
        %v608 = vpop.f32.mrf.mxu0
        %v609 = vadd.f32 0.0, %v608
        %610 = vmatmul.f32.gmra.mxu0 %v532
        %v611 = vpop.f32.mrf.mxu0
        %v612 = vadd.f32 0.0, %v611
        %613 = vdwg.mxu0
        %v614 = vadd.f32 %v501, %v567
        %v615 = vadd.f32 %v502, %v570
        %v616 = vadd.f32 %v503, %v573
        %v617 = vadd.f32 %v504, %v576
        %v618 = vadd.f32 %v505, %v579
        %v619 = vadd.f32 %v506, %v582
        %v620 = vadd.f32 %v507, %v585
        %v621 = vadd.f32 %v508, %v588
        %v622 = vadd.f32 %v509, %v591
        %v623 = vadd.f32 %v510, %v594
        %v624 = vadd.f32 %v511, %v597
        %v625 = vadd.f32 %v512, %v600
        %v626 = vadd.f32 %v513, %v603
        %v627 = vadd.f32 %v514, %v606
        %v628 = vadd.f32 %v515, %v609
        %v629 = vadd.f32 %v516, %v612
        %630 = vst [vmem:[#allocation2] sm:$0xff] %v614
        %631 = vst [vmem:[#allocation2 + $0x8] sm:$0xff] %v615
        %632 = vst [vmem:[#allocation2 + $0x10] sm:$0xff] %v616
        %633 = vst [vmem:[#allocation2 + $0x18] sm:$0xff] %v617
        %634 = vst [vmem:[#allocation2 + $0x20] sm:$0xff] %v618
        %635 = vst [vmem:[#allocation2 + $0x28] sm:$0xff] %v619
        %636 = vst [vmem:[#allocation2 + $0x30] sm:$0xff] %v620
        %637 = vst [vmem:[#allocation2 + $0x38] sm:$0xff] %v621
        %638 = vst [vmem:[#allocation2 + $0x40] sm:$0xff] %v622
        %639 = vst [vmem:[#allocation2 + $0x48] sm:$0xff] %v623
        %640 = vst [vmem:[#allocation2 + $0x50] sm:$0xff] %v624
        %641 = vst [vmem:[#allocation2 + $0x58] sm:$0xff] %v625
        %642 = vst [vmem:[#allocation2 + $0x60] sm:$0xff] %v626
        %643 = vst [vmem:[#allocation2 + $0x68] sm:$0xff] %v627
        %644 = vst [vmem:[#allocation2 + $0x70] sm:$0xff] %v628
        %645 = vst [vmem:[#allocation2 + $0x78] sm:$0xff] %v629
        %v646 = vld [vmem:[#allocation3] sm:$0xff]
        %v647 = vld [vmem:[#allocation3 + $0x8] sm:$0xff]
        %v648 = vld [vmem:[#allocation3 + $0x10] sm:$0xff]
        %v649 = vld [vmem:[#allocation3 + $0x18] sm:$0xff]
        %v650 = vld [vmem:[#allocation3 + $0x20] sm:$0xff]
        %v651 = vld [vmem:[#allocation3 + $0x28] sm:$0xff]
        %v652 = vld [vmem:[#allocation3 + $0x30] sm:$0xff]
        %v653 = vld [vmem:[#allocation3 + $0x38] sm:$0xff]
        %v654 = vld [vmem:[#allocation3 + $0x40] sm:$0xff]
        %v655 = vld [vmem:[#allocation3 + $0x48] sm:$0xff]
        %v656 = vld [vmem:[#allocation3 + $0x50] sm:$0xff]
        %v657 = vld [vmem:[#allocation3 + $0x58] sm:$0xff]
        %v658 = vld [vmem:[#allocation3 + $0x60] sm:$0xff]
        %v659 = vld [vmem:[#allocation3 + $0x68] sm:$0xff]
        %v660 = vld [vmem:[#allocation3 + $0x70] sm:$0xff]
        %v661 = vld [vmem:[#allocation3 + $0x78] sm:$0xff]
        %v662 = vld [vmem:[%s383] sm:$0xff]
        %v663 = vld [vmem:[%s383 + $0x8] sm:$0xff]
        %v664 = vld [vmem:[%s383 + $0x10] sm:$0xff]
        %v665 = vld [vmem:[%s383 + $0x18] sm:$0xff]
        %v666 = vld [vmem:[%s383 + $0x20] sm:$0xff]
        %v667 = vld [vmem:[%s383 + $0x28] sm:$0xff]
        %v668 = vld [vmem:[%s383 + $0x30] sm:$0xff]
        %v669 = vld [vmem:[%s383 + $0x38] sm:$0xff]
        %v670 = vld [vmem:[%s383 + $0x40] sm:$0xff]
        %v671 = vld [vmem:[%s383 + $0x48] sm:$0xff]
        %v672 = vld [vmem:[%s383 + $0x50] sm:$0xff]
        %v673 = vld [vmem:[%s383 + $0x58] sm:$0xff]
        %v674 = vld [vmem:[%s383 + $0x60] sm:$0xff]
        %v675 = vld [vmem:[%s383 + $0x68] sm:$0xff]
        %v676 = vld [vmem:[%s383 + $0x70] sm:$0xff]
        %v677 = vld [vmem:[%s383 + $0x78] sm:$0xff]
        %v678 = vld [vmem:[%s403] sm:$0xff]
        %v679 = vld [vmem:[%s403 + $0x8] sm:$0xff]
        %v680 = vld [vmem:[%s403 + $0x10] sm:$0xff]
        %v681 = vld [vmem:[%s403 + $0x18] sm:$0xff]
        %v682 = vld [vmem:[%s403 + $0x20] sm:$0xff]
        %v683 = vld [vmem:[%s403 + $0x28] sm:$0xff]
        %v684 = vld [vmem:[%s403 + $0x30] sm:$0xff]
        %v685 = vld [vmem:[%s403 + $0x38] sm:$0xff]
        %v686 = vld [vmem:[%s403 + $0x40] sm:$0xff]
        %v687 = vld [vmem:[%s403 + $0x48] sm:$0xff]
        %v688 = vld [vmem:[%s403 + $0x50] sm:$0xff]
        %v689 = vld [vmem:[%s403 + $0x58] sm:$0xff]
        %v690 = vld [vmem:[%s403 + $0x60] sm:$0xff]
        %v691 = vld [vmem:[%s403 + $0x68] sm:$0xff]
        %v692 = vld [vmem:[%s403 + $0x70] sm:$0xff]
        %v693 = vld [vmem:[%s403 + $0x78] sm:$0xff]
        %694 = vmatpush.msra.mxu0 %v693
        %695 = vmatpush.msra.mxu0 %v692
        %696 = vmatpush.msra.mxu0 %v691
        %697 = vmatpush.msra.mxu0 %v690
        %698 = vmatpush.msra.mxu0 %v689
        %699 = vmatpush.msra.mxu0 %v688
        %700 = vmatpush.msra.mxu0 %v687
        %701 = vmatpush.msra.mxu0 %v686
        %702 = vmatpush.msra.mxu0 %v685
        %703 = vmatpush.msra.mxu0 %v684
        %704 = vmatpush.msra.mxu0 %v683
        %705 = vmatpush.msra.mxu0 %v682
        %706 = vmatpush.msra.mxu0 %v681
        %707 = vmatpush.msra.mxu0 %v680
        %708 = vmatpush.msra.mxu0 %v679
        %709 = vmatpush.msra.mxu0 %v678
        %710 = vmatmul.f32.gmra.mxu0 %v662
        %v711 = vpop.f32.mrf.mxu0
        %v712 = vadd.f32 0.0, %v711
        %713 = vmatmul.f32.gmra.mxu0 %v663
        %v714 = vpop.f32.mrf.mxu0
        %v715 = vadd.f32 0.0, %v714
        %716 = vmatmul.f32.gmra.mxu0 %v664
        %v717 = vpop.f32.mrf.mxu0
        %v718 = vadd.f32 0.0, %v717
        %719 = vmatmul.f32.gmra.mxu0 %v665
        %v720 = vpop.f32.mrf.mxu0
        %v721 = vadd.f32 0.0, %v720
        %722 = vmatmul.f32.gmra.mxu0 %v666
        %v723 = vpop.f32.mrf.mxu0
        %v724 = vadd.f32 0.0, %v723
        %725 = vmatmul.f32.gmra.mxu0 %v667
        %v726 = vpop.f32.mrf.mxu0
        %v727 = vadd.f32 0.0, %v726
        %728 = vmatmul.f32.gmra.mxu0 %v668
        %v729 = vpop.f32.mrf.mxu0
        %v730 = vadd.f32 0.0, %v729
        %731 = vmatmul.f32.gmra.mxu0 %v669
        %v732 = vpop.f32.mrf.mxu0
        %v733 = vadd.f32 0.0, %v732
        %734 = vmatmul.f32.gmra.mxu0 %v670
        %v735 = vpop.f32.mrf.mxu0
        %v736 = vadd.f32 0.0, %v735
        %737 = vmatmul.f32.gmra.mxu0 %v671
        %v738 = vpop.f32.mrf.mxu0
        %v739 = vadd.f32 0.0, %v738
        %740 = vmatmul.f32.gmra.mxu0 %v672
        %v741 = vpop.f32.mrf.mxu0
        %v742 = vadd.f32 0.0, %v741
        %743 = vmatmul.f32.gmra.mxu0 %v673
        %v744 = vpop.f32.mrf.mxu0
        %v745 = vadd.f32 0.0, %v744
        %746 = vmatmul.f32.gmra.mxu0 %v674
        %v747 = vpop.f32.mrf.mxu0
        %v748 = vadd.f32 0.0, %v747
        %749 = vmatmul.f32.gmra.mxu0 %v675
        %v750 = vpop.f32.mrf.mxu0
        %v751 = vadd.f32 0.0, %v750
        %752 = vmatmul.f32.gmra.mxu0 %v676
        %v753 = vpop.f32.mrf.mxu0
        %v754 = vadd.f32 0.0, %v753
        %755 = vmatmul.f32.gmra.mxu0 %v677
        %v756 = vpop.f32.mrf.mxu0
        %v757 = vadd.f32 0.0, %v756
        %758 = vdwg.mxu0
        %v759 = vadd.f32 %v646, %v712
        %v760 = vadd.f32 %v647, %v715
        %v761 = vadd.f32 %v648, %v718
        %v762 = vadd.f32 %v649, %v721
        %v763 = vadd.f32 %v650, %v724
        %v764 = vadd.f32 %v651, %v727
        %v765 = vadd.f32 %v652, %v730
        %v766 = vadd.f32 %v653, %v733
        %v767 = vadd.f32 %v654, %v736
        %v768 = vadd.f32 %v655, %v739
        %v769 = vadd.f32 %v656, %v742
        %v770 = vadd.f32 %v657, %v745
        %v771 = vadd.f32 %v658, %v748
        %v772 = vadd.f32 %v659, %v751
        %v773 = vadd.f32 %v660, %v754
        %v774 = vadd.f32 %v661, %v757
        %775 = vst [vmem:[#allocation3] sm:$0xff] %v759
        %776 = vst [vmem:[#allocation3 + $0x8] sm:$0xff] %v760
        %777 = vst [vmem:[#allocation3 + $0x10] sm:$0xff] %v761
        %778 = vst [vmem:[#allocation3 + $0x18] sm:$0xff] %v762
        %779 = vst [vmem:[#allocation3 + $0x20] sm:$0xff] %v763
        %780 = vst [vmem:[#allocation3 + $0x28] sm:$0xff] %v764
        %781 = vst [vmem:[#allocation3 + $0x30] sm:$0xff] %v765
        %782 = vst [vmem:[#allocation3 + $0x38] sm:$0xff] %v766
        %783 = vst [vmem:[#allocation3 + $0x40] sm:$0xff] %v767
        %784 = vst [vmem:[#allocation3 + $0x48] sm:$0xff] %v768
        %785 = vst [vmem:[#allocation3 + $0x50] sm:$0xff] %v769
        %786 = vst [vmem:[#allocation3 + $0x58] sm:$0xff] %v770
        %787 = vst [vmem:[#allocation3 + $0x60] sm:$0xff] %v771
        %788 = vst [vmem:[#allocation3 + $0x68] sm:$0xff] %v772
        %789 = vst [vmem:[#allocation3 + $0x70] sm:$0xff] %v773
        %790 = vst [vmem:[#allocation3 + $0x78] sm:$0xff] %v774
        %p791 = scmp.eq.s32.totalorder %s36, 1
        // Predicated region
        $region65: #{tpu_custom_call.1} parent=43 // pred_check
          %p792 = pneg %p791
        $region66: #{tpu_custom_call.1} parent=43 // pred_check_branch
          %794 = sbr.rel (%p792) target = $region68
        $region67: #{tpu_custom_call.1} parent=43 // pred_region
          %v795 = vld [vmem:[#allocation2] sm:$0xff]
          %v796 = vld [vmem:[#allocation2 + $0x8] sm:$0xff]
          %v797 = vld [vmem:[#allocation2 + $0x10] sm:$0xff]
          %v798 = vld [vmem:[#allocation2 + $0x18] sm:$0xff]
          %v799 = vld [vmem:[#allocation2 + $0x20] sm:$0xff]
          %v800 = vld [vmem:[#allocation2 + $0x28] sm:$0xff]
          %v801 = vld [vmem:[#allocation2 + $0x30] sm:$0xff]
          %v802 = vld [vmem:[#allocation2 + $0x38] sm:$0xff]
          %v803 = vld [vmem:[#allocation2 + $0x40] sm:$0xff]
          %v804 = vld [vmem:[#allocation2 + $0x48] sm:$0xff]
          %v805 = vld [vmem:[#allocation2 + $0x50] sm:$0xff]
          %v806 = vld [vmem:[#allocation2 + $0x58] sm:$0xff]
          %v807 = vld [vmem:[#allocation2 + $0x60] sm:$0xff]
          %v808 = vld [vmem:[#allocation2 + $0x68] sm:$0xff]
          %v809 = vld [vmem:[#allocation2 + $0x70] sm:$0xff]
          %v810 = vld [vmem:[#allocation2 + $0x78] sm:$0xff]
          %v811 = vld [vmem:[%s460] sm:$0x1]
          %v813 = vperm.slane %v811, 0
          %v815 = vadd.f32 %v795, %v813
          %v816 = vadd.f32 %v796, %v813
          %v817 = vadd.f32 %v797, %v813
          %v818 = vadd.f32 %v798, %v813
          %v819 = vadd.f32 %v799, %v813
          %v820 = vadd.f32 %v800, %v813
          %v821 = vadd.f32 %v801, %v813
          %v822 = vadd.f32 %v802, %v813
          %v823 = vadd.f32 %v803, %v813
          %v824 = vadd.f32 %v804, %v813
          %v825 = vadd.f32 %v805, %v813
          %v826 = vadd.f32 %v806, %v813
          %v827 = vadd.f32 %v807, %v813
          %v828 = vadd.f32 %v808, %v813
          %v829 = vadd.f32 %v809, %v813
          %v830 = vadd.f32 %v810, %v813
          %v831 = vld [vmem:[#allocation3] sm:$0xff]
          %v832 = vld [vmem:[#allocation3 + $0x8] sm:$0xff]
          %v833 = vld [vmem:[#allocation3 + $0x10] sm:$0xff]
          %v834 = vld [vmem:[#allocation3 + $0x18] sm:$0xff]
          %v835 = vld [vmem:[#allocation3 + $0x20] sm:$0xff]
          %v836 = vld [vmem:[#allocation3 + $0x28] sm:$0xff]
          %v837 = vld [vmem:[#allocation3 + $0x30] sm:$0xff]
          %v838 = vld [vmem:[#allocation3 + $0x38] sm:$0xff]
          %v839 = vld [vmem:[#allocation3 + $0x40] sm:$0xff]
          %v840 = vld [vmem:[#allocation3 + $0x48] sm:$0xff]
          %v841 = vld [vmem:[#allocation3 + $0x50] sm:$0xff]
          %v842 = vld [vmem:[#allocation3 + $0x58] sm:$0xff]
          %v843 = vld [vmem:[#allocation3 + $0x60] sm:$0xff]
          %v844 = vld [vmem:[#allocation3 + $0x68] sm:$0xff]
          %v845 = vld [vmem:[#allocation3 + $0x70] sm:$0xff]
          %v846 = vld [vmem:[#allocation3 + $0x78] sm:$0xff]
          %v847 = vld [vmem:[%s463] sm:$0x1]
          %v849 = vperm.slane %v847, 0
          %v851 = vadd.f32 %v831, %v849
          %v852 = vadd.f32 %v832, %v849
          %v853 = vadd.f32 %v833, %v849
          %v854 = vadd.f32 %v834, %v849
          %v855 = vadd.f32 %v835, %v849
          %v856 = vadd.f32 %v836, %v849
          %v857 = vadd.f32 %v837, %v849
          %v858 = vadd.f32 %v838, %v849
          %v859 = vadd.f32 %v839, %v849
          %v860 = vadd.f32 %v840, %v849
          %v861 = vadd.f32 %v841, %v849
          %v862 = vadd.f32 %v842, %v849
          %v863 = vadd.f32 %v843, %v849
          %v864 = vadd.f32 %v844, %v849
          %v865 = vadd.f32 %v845, %v849
          %v866 = vadd.f32 %v846, %v849
          %v867 = vmul.f32 %v815, %v851
          %v868 = vmul.f32 %v816, %v852
          %v869 = vmul.f32 %v817, %v853
          %v870 = vmul.f32 %v818, %v854
          %v871 = vmul.f32 %v819, %v855
          %v872 = vmul.f32 %v820, %v856
          %v873 = vmul.f32 %v821, %v857
          %v874 = vmul.f32 %v822, %v858
          %v875 = vmul.f32 %v823, %v859
          %v876 = vmul.f32 %v824, %v860
          %v877 = vmul.f32 %v825, %v861
          %v878 = vmul.f32 %v826, %v862
          %v879 = vmul.f32 %v827, %v863
          %v880 = vmul.f32 %v828, %v864
          %v881 = vmul.f32 %v829, %v865
          %v882 = vmul.f32 %v830, %v866
          %883 = vst [vmem:[%s453] sm:$0xff] %v867
          %884 = vst [vmem:[%s453 + $0x8] sm:$0xff] %v868
          %885 = vst [vmem:[%s453 + $0x10] sm:$0xff] %v869
          %886 = vst [vmem:[%s453 + $0x18] sm:$0xff] %v870
          %887 = vst [vmem:[%s453 + $0x20] sm:$0xff] %v871
          %888 = vst [vmem:[%s453 + $0x28] sm:$0xff] %v872
          %889 = vst [vmem:[%s453 + $0x30] sm:$0xff] %v873
          %890 = vst [vmem:[%s453 + $0x38] sm:$0xff] %v874
          %891 = vst [vmem:[%s453 + $0x40] sm:$0xff] %v875
          %892 = vst [vmem:[%s453 + $0x48] sm:$0xff] %v876
          %893 = vst [vmem:[%s453 + $0x50] sm:$0xff] %v877
          %894 = vst [vmem:[%s453 + $0x58] sm:$0xff] %v878
          %895 = vst [vmem:[%s453 + $0x60] sm:$0xff] %v879
          %896 = vst [vmem:[%s453 + $0x68] sm:$0xff] %v880
          %897 = vst [vmem:[%s453 + $0x70] sm:$0xff] %v881
          %898 = vst [vmem:[%s453 + $0x78] sm:$0xff] %v882
        $region68: #{tpu_custom_call.1} parent=43 // pred_fallthru
          _
        %s899 = sand.u32 %s222, 1
        %s900 = scalar_lea.sflag [#allocation6], %s899
        %s901 = sand.u32 %s222, 1
        %s902 = smul.addr %s901, 128
        %s903 = scalar_lea.vmem [#allocation12], %s902
        // Predicated region
        $region69: #{tpu_custom_call.1} parent=43 // pred_check
          %p904 = pneg %p232
        $region70: #{tpu_custom_call.1} parent=43 // pred_check_branch
          %906 = sbr.rel (%p904) target = $region72
        $region71: #{tpu_custom_call.1} parent=43 // pred_region
          %s907 = smul.u32 16, %s34
          %909 = vsyncadd %s900, 0
          %s910 = smul.addr %s907, 2
          %s911 = sadd.s32 %s35, %s910
          %s912 = smul.addr %s911, 8
          %s913 = scalar_lea.hbm %s6, %s912
          %s914 = sshll.u32 %s903, 4
          %s915 = int_to_ptr.vmem [resolvable:$true] %s914
          %s916 = sshll.u32 %s913, 4
          %s917 = int_to_ptr.hbm [resolvable:$true] %s916
          %922 = dma.vmem_to_hbm [thread:$0]  %s915, 2048, %s917, %s900, 128, 256, 8
        $region72: #{tpu_custom_call.1} parent=43 // pred_fallthru
          _
      $region44: #{tpu_custom_call.1} parent=5 // pred_fallthru
        _
      %p923 = scmp.le.s32.totalorder 2, %s24
      // Predicated region
      $region73: #{tpu_custom_call.1} parent=5 // pred_check
        %p924 = pneg %p923
      $region74: #{tpu_custom_call.1} parent=5 // pred_check_branch
        %926 = sbr.rel (%p924) target = $region76
      $region75: #{tpu_custom_call.1} parent=5 // pred_region
        %s927 = ssub.s32 %s24, 2
        // Predicated region
        $region77: #{tpu_custom_call.1} parent=75 // pred_check
          %p928 = pneg %p238
        $region78: #{tpu_custom_call.1} parent=75 // pred_check_branch
          %930 = sbr.rel (%p928) target = $region80
        $region79: #{tpu_custom_call.1} parent=75 // pred_region
          %s931 = sand.u32 %s223, 1
          %s932 = scalar_lea.sflag [#allocation6], %s931
          %s933 = sand.u32 %s223, 1
          %s934 = smul.addr %s933, 128
          %s935 = scalar_lea.vmem [#allocation12], %s934
          %937 = dma.done %s932, 2048
        $region80: #{tpu_custom_call.1} parent=75 // pred_fallthru
          _
      $region76: #{tpu_custom_call.1} parent=5 // pred_fallthru
        _
    $region6: #{tpu_custom_call.1} parent=1 // loop_footer
      %s28 = sadd.s32 1, %s24
    $region7: #{tpu_custom_call.1} parent=1 // loop_footer_branch
      %23 = sbr.rel target = $region3
    $region8: #{tpu_custom_call.1} parent=1 // loop_exit
      _
    %938 = vsyncpa [#allocation5], 1
    %s939 = scalar_lea.sflag [#allocation5], 1
    %940 = vsyncpa %s939, 1
    %941 = vsyncpa [#allocation8], 1
    %s942 = scalar_lea.sflag [#allocation8], 1
    %943 = vsyncpa %s942, 1
    %944 = vsyncpa [#allocation11], 1
    %s945 = scalar_lea.sflag [#allocation11], 1
    %946 = vsyncpa %s945, 1
    %947 = vsyncpa [#allocation6], 1
    %s948 = scalar_lea.sflag [#allocation6], 1
    %949 = vsyncpa %s948, 1

</llo_original>
